<compile_context>
chip_gen: v7x
topology: tpu7x:2x2x1
jax: 0.10.0
libtpu: 0.0.40
codegen_flags: <defaults>
</compile_context>

<pallas_src>
import jax
import jax.numpy as jnp
from jax.experimental import pallas as pl
from jax.experimental.pallas import tpu as pltpu

# ---- small, MLPDecoder-consistent config ------------------------------------
BATCH = 256         # batch rows processed per call (amortizes launch + weight DMA)
TILE_M = 128        # rows per grid step (v5e MXU-natural; 256 also fine on v6e/v7x)
INPUT_DIM = 128     # input_dim   (lane-dense)
HIDDEN_DIM = 256    # hidden_dim  (lane-dense)
OUTPUT_DIM = 128    # output_dim  (lane-dense)
NUM_LAYERS = 3      # encoder + (NUM_LAYERS - 2) hidden layers + classifier
NUM_MID = NUM_LAYERS - 2


# ---------------------------------------------------------------------------
# Fused kernel: one grid step computes the whole MLP for TILE_M rows.
# Weights/biases are resident in VMEM (constant index_map) across the grid.
# ---------------------------------------------------------------------------
def _make_mlp_kernel(num_mid, out_dim):
    def body(x_ref, w_enc_ref, w_mid_ref, w_cls_ref, b_ref, o_ref):
        # encoder Linear -> ReLU (dropout = identity in eval mode)
        h = jnp.dot(x_ref[...].astype(jnp.bfloat16), w_enc_ref[...],
                    preferred_element_type=jnp.float32)
        h = jnp.maximum(h + b_ref[0:1, :], 0.0)

        # hidden Linears -> ReLU (statically unrolled; weights stay in VMEM)
        for l in range(num_mid):
            h = jnp.dot(h.astype(jnp.bfloat16), w_mid_ref[l],
                        preferred_element_type=jnp.float32)
            h = jnp.maximum(h + b_ref[1 + l:2 + l, :], 0.0)

        # classifier Linear (no activation); classifier bias stored padded to
        # HIDDEN_DIM in the stacked bias array -> take the first out_dim lanes.
        out = jnp.dot(h.astype(jnp.bfloat16), w_cls_ref[...],
                      preferred_element_type=jnp.float32)
        o_ref[...] = out + b_ref[1 + num_mid:2 + num_mid, :out_dim]

    if num_mid > 0:
        return body

    def kernel_no_mid(x_ref, w_enc_ref, w_cls_ref, b_ref, o_ref):
        return body(x_ref, w_enc_ref, None, w_cls_ref, b_ref, o_ref)

    return kernel_no_mid


def mlp_decoder_forward(x, params, *, tile_m=TILE_M):
    """Fused pallas_call for the whole MLPDecoder forward pass (eval mode)."""
    batch, in_dim = x.shape
    hidden = params["w_enc"].shape[1]
    out_dim = params["w_cls"].shape[1]
    num_layers = params["biases"].shape[0]
    num_mid = num_layers - 2
    assert batch % tile_m == 0, "batch must be a multiple of tile_m"

    grid = (batch // tile_m,)

    in_specs = [
        pl.BlockSpec((tile_m, in_dim), lambda i: (i, 0)),       # x: tiled
        pl.BlockSpec((in_dim, hidden), lambda i: (0, 0)),       # w_enc: resident
    ]
    flat_inputs = [x, params["w_enc"]]
    if num_mid > 0:
        in_specs.append(
            pl.BlockSpec((num_mid, hidden, hidden), lambda i: (0, 0, 0)))
        flat_inputs.append(params["w_mid"])
    in_specs += [
        pl.BlockSpec((hidden, out_dim), lambda i: (0, 0)),       # w_cls: resident
        pl.BlockSpec((num_layers, hidden), lambda i: (0, 0)),    # biases: resident
    ]
    flat_inputs += [params["w_cls"], params["biases"]]

    flops = 2 * batch * (in_dim * hidden
                         + num_mid * hidden * hidden
                         + hidden * out_dim)
    bytes_accessed = (
        x.size * x.dtype.itemsize
        + batch * out_dim * 4
        + params["w_enc"].size * params["w_enc"].dtype.itemsize
        + params["w_cls"].size * params["w_cls"].dtype.itemsize
        + params["biases"].size * params["biases"].dtype.itemsize
        + (params["w_mid"].size * params["w_mid"].dtype.itemsize
           if num_mid > 0 else 0))

    return pl.pallas_call(
        _make_mlp_kernel(num_mid, out_dim),
        out_shape=jax.ShapeDtypeStruct((batch, out_dim), jnp.float32),
        grid=grid,
        in_specs=in_specs,
        out_specs=pl.BlockSpec((tile_m, out_dim), lambda i: (i, 0)),
        compiler_params=pltpu.CompilerParams(
            dimension_semantics=("parallel",),   # v7x: split batch across 2 TCs
            vmem_limit_bytes=64 * 1024 * 1024),
        cost_estimate=pl.CostEstimate(flops=flops, transcendentals=0,
                                      bytes_accessed=bytes_accessed),
    )(*flat_inputs)


# ---------------------------------------------------------------------------
# Parameter init (deterministic, synthetic; weights stored as [in, out]).
# NOTE: a PyTorch state_dict stores Linear weights as [out, in] and must be
# transposed before being fed here.
# ---------------------------------------------------------------------------
def init_params(key, input_dim=INPUT_DIM, hidden_dim=HIDDEN_DIM,
                output_dim=OUTPUT_DIM, num_layers=NUM_LAYERS):
    num_mid = num_layers - 2
    keys = jax.random.split(key, 2 * num_layers)

    def w(k, fin, fout):
        return jax.random.normal(k, (fin, fout), jnp.float32) * 0.05

    def b(k, fout):
        return jax.random.normal(k, (fout,), jnp.float32) * 0.05

    w_enc = w(keys[0], input_dim, hidden_dim)
    b_enc = b(keys[1], hidden_dim)
    w_mid, b_mid = [], []
    for l in range(num_mid):
        w_mid.append(w(keys[2 + 2 * l], hidden_dim, hidden_dim))
        b_mid.append(b(keys[3 + 2 * l], hidden_dim))
    w_cls = w(keys[2 + 2 * num_mid], hidden_dim, output_dim)
    b_cls = b(keys[3 + 2 * num_mid], output_dim)

    # Stack biases into one (num_layers, hidden_dim) f32 array; the classifier
    # bias (output_dim wide) is zero-padded to hidden_dim lanes.
    b_cls_padded = jnp.zeros((hidden_dim,), jnp.float32).at[:output_dim].set(b_cls)
    biases = jnp.stack([b_enc] + b_mid + [b_cls_padded], axis=0)

    params = dict(
        w_enc=w_enc.astype(jnp.bfloat16),
        w_cls=w_cls.astype(jnp.bfloat16),
        biases=biases,
    )
    if num_mid > 0:
        params["w_mid"] = jnp.stack(w_mid, axis=0).astype(jnp.bfloat16)
    return params


# ---------------------------------------------------------------------------
# Pure-JAX reference (mirrors MLPDecoder.forward in eval mode, with the same
# bf16-weight / f32-accumulation numerics as the kernel).
# ---------------------------------------------------------------------------
def mlp_decoder_ref(x, params):
    num_layers = params["biases"].shape[0]
    num_mid = num_layers - 2
    out_dim = params["w_cls"].shape[1]

    h = jnp.dot(x.astype(jnp.bfloat16), params["w_enc"],
                preferred_element_type=jnp.float32)
    h = jnp.maximum(h + params["biases"][0], 0.0)
    for l in range(num_mid):
        h = jnp.dot(h.astype(jnp.bfloat16), params["w_mid"][l],
                    preferred_element_type=jnp.float32)
        h = jnp.maximum(h + params["biases"][1 + l], 0.0)
    out = jnp.dot(h.astype(jnp.bfloat16), params["w_cls"],
                  preferred_element_type=jnp.float32)
    return out + params["biases"][1 + num_mid][:out_dim]


if __name__ == "__main__":
    key = jax.random.PRNGKey(0)
    k_x, k_p = jax.random.split(key)

    inputs = jax.random.normal(k_x, (BATCH, INPUT_DIM), jnp.float32)
    params = init_params(k_p)

    out = jax.block_until_ready(mlp_decoder_forward(inputs, params))

    ref = mlp_decoder_ref(inputs, params)
    assert out.shape == (BATCH, OUTPUT_DIM)
    assert jnp.allclose(out, ref, atol=2e-2, rtol=2e-2), "mismatch vs reference"

    print("KERNEL_OK")
</pallas_src>

<mosaic_0001>
module attributes {stable_mosaic.version = 11 : i64} {
  func.func @body(%arg0: i32, %arg1: memref<128x128xf32, #tpu.memory_space<vmem>>, %arg2: memref<128x256xbf16, #tpu.memory_space<vmem>>, %arg3: memref<1x256x256xbf16, #tpu.memory_space<vmem>>, %arg4: memref<256x128xbf16, #tpu.memory_space<vmem>>, %arg5: memref<3x256xf32, #tpu.memory_space<vmem>>, %arg6: memref<128x128xf32, #tpu.memory_space<vmem>>) attributes {dimension_semantics = [#tpu.dimension_semantics<parallel>], iteration_bounds = array<i64: 2>, scalar_prefetch = 0 : i64, scratch_operands = 0 : i64, tpu.core_type = #tpu.core_type<tc>, window_params = [{transform_indices = @transform_0, window_bounds = array<i64: 128, 128>}, {pipeline_mode = #tpu.pipeline_mode<synchronous>, transform_indices = @transform_1, window_bounds = array<i64: 128, 256>}, {pipeline_mode = #tpu.pipeline_mode<synchronous>, transform_indices = @transform_2, window_bounds = array<i64: 1, 256, 256>}, {pipeline_mode = #tpu.pipeline_mode<synchronous>, transform_indices = @transform_3, window_bounds = array<i64: 256, 128>}, {pipeline_mode = #tpu.pipeline_mode<synchronous>, transform_indices = @transform_4, window_bounds = array<i64: 3, 256>}, {transform_indices = @transform_5, window_bounds = array<i64: 128, 128>}]} {
    %c0 = arith.constant 0 : index
    %c0_0 = arith.constant 0 : index
    %0 = vector.load %arg1[%c0, %c0_0] : memref<128x128xf32, #tpu.memory_space<vmem>>, vector<128x128xf32>
    %1 = arith.truncf %0 : vector<128x128xf32> to vector<128x128xbf16>
    %c0_1 = arith.constant 0 : index
    %c0_2 = arith.constant 0 : index
    %2 = vector.load %arg2[%c0_1, %c0_2] : memref<128x256xbf16, #tpu.memory_space<vmem>>, vector<128x256xbf16>
    %cst = arith.constant dense<0.000000e+00> : vector<128x256xf32>
    %3 = tpu.matmul %1, %2, %cst {dimension_numbers = #tpu.dot_dimension_numbers<[1], [0], [0], [1], [0, 0, 1, 1], [], []>} : vector<128x128xbf16>, vector<128x256xbf16>, vector<128x256xf32> -> vector<128x256xf32>
    %c0_3 = arith.constant 0 : index
    %c0_4 = arith.constant 0 : index
    %4 = vector.load %arg5[%c0_3, %c0_4] : memref<3x256xf32, #tpu.memory_space<vmem>>, vector<1x256xf32>
    %5 = vector.broadcast %4 : vector<1x256xf32> to vector<128x256xf32>
    %6 = arith.addf %3, %5 : vector<128x256xf32>
    %cst_5 = arith.constant 0.000000e+00 : f32
    %7 = vector.broadcast %cst_5 : f32 to vector<128x256xf32>
    %8 = arith.maximumf %6, %7 : vector<128x256xf32>
    %9 = arith.truncf %8 : vector<128x256xf32> to vector<128x256xbf16>
    %c0_6 = arith.constant 0 : index
    %c0_7 = arith.constant 0 : index
    %c0_8 = arith.constant 0 : index
    %10 = vector.load %arg3[%c0_6, %c0_7, %c0_8] : memref<1x256x256xbf16, #tpu.memory_space<vmem>>, vector<1x256x256xbf16>
    %11 = vector.shape_cast %10 : vector<1x256x256xbf16> to vector<256x256xbf16>
    %cst_9 = arith.constant dense<0.000000e+00> : vector<128x256xf32>
    %12 = tpu.matmul %9, %11, %cst_9 {dimension_numbers = #tpu.dot_dimension_numbers<[1], [0], [0], [1], [0, 0, 1, 1], [], []>} : vector<128x256xbf16>, vector<256x256xbf16>, vector<128x256xf32> -> vector<128x256xf32>
    %c1 = arith.constant 1 : index
    %c0_10 = arith.constant 0 : index
    %13 = vector.load %arg5[%c1, %c0_10] : memref<3x256xf32, #tpu.memory_space<vmem>>, vector<1x256xf32>
    %14 = vector.broadcast %13 : vector<1x256xf32> to vector<128x256xf32>
    %15 = arith.addf %12, %14 : vector<128x256xf32>
    %cst_11 = arith.constant 0.000000e+00 : f32
    %16 = vector.broadcast %cst_11 : f32 to vector<128x256xf32>
    %17 = arith.maximumf %15, %16 : vector<128x256xf32>
    %18 = arith.truncf %17 : vector<128x256xf32> to vector<128x256xbf16>
    %c0_12 = arith.constant 0 : index
    %c0_13 = arith.constant 0 : index
    %19 = vector.load %arg4[%c0_12, %c0_13] : memref<256x128xbf16, #tpu.memory_space<vmem>>, vector<256x128xbf16>
    %cst_14 = arith.constant dense<0.000000e+00> : vector<128x128xf32>
    %20 = tpu.matmul %18, %19, %cst_14 {dimension_numbers = #tpu.dot_dimension_numbers<[1], [0], [0], [1], [0, 0, 1, 1], [], []>} : vector<128x256xbf16>, vector<256x128xbf16>, vector<128x128xf32> -> vector<128x128xf32>
    %c2 = arith.constant 2 : index
    %c0_15 = arith.constant 0 : index
    %21 = vector.load %arg5[%c2, %c0_15] : memref<3x256xf32, #tpu.memory_space<vmem>>, vector<1x128xf32>
    %22 = vector.broadcast %21 : vector<1x128xf32> to vector<128x128xf32>
    %23 = arith.addf %20, %22 : vector<128x128xf32>
    %c0_16 = arith.constant 0 : index
    %c0_17 = arith.constant 0 : index
    %24 = vector.load %arg6[%c0_16, %c0_17] : memref<128x128xf32, #tpu.memory_space<vmem>>, vector<128x128xf32>
    tpu.vector_store %arg6[%c0_16, %c0_17], %23 {strides = array<i32>} : memref<128x128xf32, #tpu.memory_space<vmem>>, vector<128x128xf32>,
    return
  }
  func.func @transform_0(%arg0: i32) -> (i32, i32) {
    %c0_i32 = arith.constant 0 : i32
    %c0_i32_0 = arith.constant 0 : i32
    return %arg0, %c0_i32 : i32, i32
  }
  func.func @transform_1(%arg0: i32) -> (i32, i32) {
    %c0_i32 = arith.constant 0 : i32
    %c0_i32_0 = arith.constant 0 : i32
    %c0_i32_1 = arith.constant 0 : i32
    return %c0_i32, %c0_i32_0 : i32, i32
  }
  func.func @transform_2(%arg0: i32) -> (i32, i32, i32) {
    %c0_i32 = arith.constant 0 : i32
    %c0_i32_0 = arith.constant 0 : i32
    %c0_i32_1 = arith.constant 0 : i32
    %c0_i32_2 = arith.constant 0 : i32
    return %c0_i32, %c0_i32_0, %c0_i32_1 : i32, i32, i32
  }
  func.func @transform_3(%arg0: i32) -> (i32, i32) {
    %c0_i32 = arith.constant 0 : i32
    %c0_i32_0 = arith.constant 0 : i32
    %c0_i32_1 = arith.constant 0 : i32
    return %c0_i32, %c0_i32_0 : i32, i32
  }
  func.func @transform_4(%arg0: i32) -> (i32, i32) {
    %c0_i32 = arith.constant 0 : i32
    %c0_i32_0 = arith.constant 0 : i32
    %c0_i32_1 = arith.constant 0 : i32
    return %c0_i32, %c0_i32_0 : i32, i32
  }
  func.func @transform_5(%arg0: i32) -> (i32, i32) {
    %c0_i32 = arith.constant 0 : i32
    %c0_i32_0 = arith.constant 0 : i32
    return %arg0, %c0_i32 : i32, i32
  }
}

</mosaic_0001>

<llo_original>
// kernel: tpu_custom_call.1
$region0: #{tpu_custom_call.1}
  #allocation0 [shape = 'u32[]', space=smem, size = 0x4, offset = 0x4, fixed_abs, tag = 'smem constant byte address 0x4 - core index']
  #allocation1 [shape = 'u32[144,128]{1,0:T(1,128)}', space=vmem, size = 0x12000, scoped, tag = 'internal scratch']
  %s0 = inlined_call_operand.hbm [shape: f32[256,128], index: 0, kind: input, shape index: {}]
  %s1 = inlined_call_operand.hbm [shape: bf16[128,256], index: 1, kind: input, shape index: {}]
  %s2 = inlined_call_operand.hbm [shape: bf16[1,256,256], index: 2, kind: input, shape index: {}]
  %s3 = inlined_call_operand.hbm [shape: bf16[256,128], index: 3, kind: input, shape index: {}]
  %s4 = inlined_call_operand.hbm [shape: f32[3,256], index: 4, kind: input, shape index: {}]
  %s5 = inlined_call_operand.hbm [shape: f32[256,128], index: 5, kind: output, shape index: {}]
  %s6 = sld [smem:[#allocation0]]
  $region73: #{tpu_custom_call.1} parent=0
    _
  %s8 = ssub.s32 1, %s6
  %s9 = scalar_select 0, %s8, %s6
  $region1: #{tpu_custom_call.1} parent=0
    #allocation2 [shape = 'u8[131072]{0}', space=vmem, size = 0x20000, scoped, tag = 'input window, operand 0']
    #allocation3 [shape = 's32[2]{0}', space=sflag, size = 0x8, scoped, tag = 'scoped memory for tpu_custom_call.1']
    #allocation4 [shape = 's32[2]{0}', space=sflag, size = 0x8, scoped, tag = 'scoped memory for tpu_custom_call.1']
    #allocation5 [shape = 'u8[65536]{0}', space=vmem, size = 0x10000, scoped, tag = 'input window, operand 1, single buffered']
    #allocation6 [shape = 's32[1]{0}', space=sflag, size = 0x4, scoped, tag = 'scoped memory for tpu_custom_call.1']
    #allocation7 [shape = 'u8[131072]{0}', space=vmem, size = 0x20000, scoped, tag = 'input window, operand 2, single buffered']
    #allocation8 [shape = 'u8[65536]{0}', space=vmem, size = 0x10000, scoped, tag = 'input window, operand 3, single buffered']
    #allocation9 [shape = 's32[1]{0}', space=sflag, size = 0x4, scoped, tag = 'scoped memory for tpu_custom_call.1']
    #allocation10 [shape = 'u8[4096]{0}', space=vmem, size = 0x1000, scoped, tag = 'input window, operand 4, single buffered']
    #allocation11 [shape = 'u8[131072]{0}', space=vmem, size = 0x20000, scoped, tag = 'output window, operand 0']
    %10 = vsyncpa [#allocation3], 0
    %s11 = scalar_lea.sflag [#allocation3], 1
    %12 = vsyncpa %s11, 0
    %13 = vsyncpa [#allocation6], 0
    %14 = vsyncpa [#allocation9], 0
    %15 = vsyncpa [#allocation4], 0
    %s16 = scalar_lea.sflag [#allocation4], 1
    %17 = vsyncpa %s16, 0
    loop: start=0, step=1, limit=4
    $region2: #{tpu_custom_call.1} parent=1 // loop_pre_header
      _
    $region3: #{tpu_custom_call.1} parent=1 // loop_header
      %s19 = sphi 0, %s23
      %p20 = scmp.ge.s32.totalorder %s19, 4
      %s29 = sphi 0, %s31
      %s32 = sphi 0, %s29
      %s33 = sphi 0, %s32
      %s49 = sphi 0, %s33
      %s53 = sphi 0, %s53
      %s55 = sphi 0, %s53
      %s56 = sphi 0, %s55
      %s70 = sphi 0, %s56
      %s74 = sphi 0, %s74
      %s76 = sphi 0, %s74
      %s77 = sphi 0, %s76
      %s91 = sphi 0, %s77
      %s95 = sphi 0, %s95
      %s97 = sphi 0, %s95
      %s98 = sphi 0, %s97
      %s112 = sphi 0, %s98
      %s116 = sphi 0, %s116
      %s118 = sphi 0, %s116
      %s119 = sphi 0, %s118
      %s133 = sphi 0, %s119
      %s139 = sphi 0, %s141
      %s142 = sphi 0, %s139
      %s143 = sphi 0, %s142
      %s159 = sphi 0, %s143
    $region4: #{tpu_custom_call.1} parent=1 // loop_header_branch
      %22 = sbr.rel (%p20) target = $region8
    $region5: #{tpu_custom_call.1} parent=1 // loop_body
      %s24 = ssub.s32 %s19, 1
      %s25 = ssub.s32 %s19, 2
      %s26 = sadd.s32 %s19, 1
      %s27 = ssub.s32 %s19, %s26
      %p28 = scmp.eq.s32.totalorder %s27, 0
      %s30 = sadd.s32 %s29, 1
      %s31 = scalar_select %p28, %s29, %s30
      %p34 = pneg %p28
      %p35 = scmp.eq.s32.totalorder %s19, 1
      %p36 = por %p34, %p35
      %p37 = scmp.ne.s32.totalorder %s29, %s32
      %p38 = scmp.eq.s32.totalorder %s19, 0
      %p39 = por %p37, %p38
      %p40 = scmp.ne.s32.totalorder %s29, %s32
      %p41 = scmp.eq.s32.totalorder %s24, 1
      %p42 = por %p40, %p41
      %p43 = scmp.ne.s32.totalorder %s32, %s33
      %p44 = scmp.eq.s32.totalorder %s24, 0
      %p45 = por %p43, %p44
      %p46 = scmp.ne.s32.totalorder %s32, %s33
      %p47 = scmp.eq.s32.totalorder %s25, 1
      %p48 = por %p46, %p47
      %p50 = scmp.ne.s32.totalorder %s33, %s49
      %p51 = scmp.eq.s32.totalorder %s25, 0
      %p52 = por %p50, %p51
      %s54 = sadd.s32 %s53, 1
      %p57 = scmp.eq.s32.totalorder %s19, 1
      %p58 = scmp.ne.s32.totalorder %s53, %s55
      %p59 = scmp.eq.s32.totalorder %s19, 0
      %p60 = por %p58, %p59
      %p61 = scmp.ne.s32.totalorder %s53, %s55
      %p62 = scmp.eq.s32.totalorder %s24, 1
      %p63 = por %p61, %p62
      %p64 = scmp.ne.s32.totalorder %s55, %s56
      %p65 = scmp.eq.s32.totalorder %s24, 0
      %p66 = por %p64, %p65
      %p67 = scmp.ne.s32.totalorder %s55, %s56
      %p68 = scmp.eq.s32.totalorder %s25, 1
      %p69 = por %p67, %p68
      %p71 = scmp.ne.s32.totalorder %s56, %s70
      %p72 = scmp.eq.s32.totalorder %s25, 0
      %p73 = por %p71, %p72
      %s75 = sadd.s32 %s74, 1
      %p78 = scmp.eq.s32.totalorder %s19, 1
      %p79 = scmp.ne.s32.totalorder %s74, %s76
      %p80 = scmp.eq.s32.totalorder %s19, 0
      %p81 = por %p79, %p80
      %p82 = scmp.ne.s32.totalorder %s74, %s76
      %p83 = scmp.eq.s32.totalorder %s24, 1
      %p84 = por %p82, %p83
      %p85 = scmp.ne.s32.totalorder %s76, %s77
      %p86 = scmp.eq.s32.totalorder %s24, 0
      %p87 = por %p85, %p86
      %p88 = scmp.ne.s32.totalorder %s76, %s77
      %p89 = scmp.eq.s32.totalorder %s25, 1
      %p90 = por %p88, %p89
      %p92 = scmp.ne.s32.totalorder %s77, %s91
      %p93 = scmp.eq.s32.totalorder %s25, 0
      %p94 = por %p92, %p93
      %s96 = sadd.s32 %s95, 1
      %p99 = scmp.eq.s32.totalorder %s19, 1
      %p100 = scmp.ne.s32.totalorder %s95, %s97
      %p101 = scmp.eq.s32.totalorder %s19, 0
      %p102 = por %p100, %p101
      %p103 = scmp.ne.s32.totalorder %s95, %s97
      %p104 = scmp.eq.s32.totalorder %s24, 1
      %p105 = por %p103, %p104
      %p106 = scmp.ne.s32.totalorder %s97, %s98
      %p107 = scmp.eq.s32.totalorder %s24, 0
      %p108 = por %p106, %p107
      %p109 = scmp.ne.s32.totalorder %s97, %s98
      %p110 = scmp.eq.s32.totalorder %s25, 1
      %p111 = por %p109, %p110
      %p113 = scmp.ne.s32.totalorder %s98, %s112
      %p114 = scmp.eq.s32.totalorder %s25, 0
      %p115 = por %p113, %p114
      %s117 = sadd.s32 %s116, 1
      %p120 = scmp.eq.s32.totalorder %s19, 1
      %p121 = scmp.ne.s32.totalorder %s116, %s118
      %p122 = scmp.eq.s32.totalorder %s19, 0
      %p123 = por %p121, %p122
      %p124 = scmp.ne.s32.totalorder %s116, %s118
      %p125 = scmp.eq.s32.totalorder %s24, 1
      %p126 = por %p124, %p125
      %p127 = scmp.ne.s32.totalorder %s118, %s119
      %p128 = scmp.eq.s32.totalorder %s24, 0
      %p129 = por %p127, %p128
      %p130 = scmp.ne.s32.totalorder %s118, %s119
      %p131 = scmp.eq.s32.totalorder %s25, 1
      %p132 = por %p130, %p131
      %p134 = scmp.ne.s32.totalorder %s119, %s133
      %p135 = scmp.eq.s32.totalorder %s25, 0
      %p136 = por %p134, %p135
      %s137 = ssub.s32 %s19, %s26
      %p138 = scmp.eq.s32.totalorder %s137, 0
      %s140 = sadd.s32 %s139, 1
      %s141 = scalar_select %p138, %s139, %s140
      %p144 = pneg %p138
      %p145 = scmp.eq.s32.totalorder %s19, 1
      %p146 = por %p144, %p145
      %p147 = scmp.ne.s32.totalorder %s139, %s142
      %p148 = scmp.eq.s32.totalorder %s19, 0
      %p149 = por %p147, %p148
      %p150 = scmp.ne.s32.totalorder %s139, %s142
      %p151 = scmp.eq.s32.totalorder %s24, 1
      %p152 = por %p150, %p151
      %p153 = scmp.ne.s32.totalorder %s142, %s143
      %p154 = scmp.eq.s32.totalorder %s24, 0
      %p155 = por %p153, %p154
      %p156 = scmp.ne.s32.totalorder %s142, %s143
      %p157 = scmp.eq.s32.totalorder %s25, 1
      %p158 = por %p156, %p157
      %p160 = scmp.ne.s32.totalorder %s143, %s159
      %p161 = scmp.eq.s32.totalorder %s25, 0
      %p162 = por %p160, %p161
      %p163 = scmp.le.s32.totalorder 1, %s19
      %p164 = scmp.lt.s32.totalorder %s19, 3
      %p165 = pnand %p163, %p164
      %p166 = pneg %p165
      // Predicated region
      $region9: #{tpu_custom_call.1} parent=5 // pred_check
        _
      $region10: #{tpu_custom_call.1} parent=5 // pred_check_branch
        %168 = sbr.rel (%p165) target = $region12
      $region11: #{tpu_custom_call.1} parent=5 // pred_region
        %s169 = ssub.s32 %s19, 1
        // Predicated region
        $region13: #{tpu_custom_call.1} parent=11 // pred_check
          %p170 = pneg %p66
        $region14: #{tpu_custom_call.1} parent=11 // pred_check_branch
          %172 = sbr.rel (%p170) target = $region16
        $region15: #{tpu_custom_call.1} parent=11 // pred_region
          %s174 = ssub.s32 2048, 2048
          %175 = vsyncadd [#allocation6], %s174
          %s176 = sshll.u32 [#allocation5], 4
          %s177 = int_to_ptr.vmem [resolvable:$true] %s176
          %182 = dma.hbm_to_vmem [thread:$0]  %s1, 2048, %s177, [#allocation6], 128, 128, 8
        $region16: #{tpu_custom_call.1} parent=11 // pred_fallthru
          _
        // Predicated region
        $region17: #{tpu_custom_call.1} parent=11 // pred_check
          %p183 = pneg %p87
        $region18: #{tpu_custom_call.1} parent=11 // pred_check_branch
          %185 = sbr.rel (%p183) target = $region20
        $region19: #{tpu_custom_call.1} parent=11 // pred_region
          %s187 = ssub.s32 4096, 4096
          %188 = vsyncadd [#allocation6], %s187
          %s189 = sshll.u32 [#allocation7], 4
          %s190 = int_to_ptr.vmem [resolvable:$true] %s189
          %195 = dma.hbm_to_vmem [thread:$0]  %s2, 4096, %s190, [#allocation6], 128, 128, 8
        $region20: #{tpu_custom_call.1} parent=11 // pred_fallthru
          _
        // Predicated region
        $region21: #{tpu_custom_call.1} parent=11 // pred_check
          %p196 = pneg %p108
        $region22: #{tpu_custom_call.1} parent=11 // pred_check_branch
          %198 = sbr.rel (%p196) target = $region24
        $region23: #{tpu_custom_call.1} parent=11 // pred_region
          %s200 = ssub.s32 2048, 2048
          %201 = vsyncadd [#allocation9], %s200
          %s202 = sshll.u32 [#allocation8], 4
          %s203 = int_to_ptr.vmem [resolvable:$true] %s202
          %208 = dma.hbm_to_vmem [thread:$0]  %s3, 2048, %s203, [#allocation9], 64, 64, 4
        $region24: #{tpu_custom_call.1} parent=11 // pred_fallthru
          _
        // Predicated region
        $region25: #{tpu_custom_call.1} parent=11 // pred_check
          %p209 = pneg %p129
        $region26: #{tpu_custom_call.1} parent=11 // pred_check_branch
          %211 = sbr.rel (%p209) target = $region28
        $region27: #{tpu_custom_call.1} parent=11 // pred_region
          %s213 = ssub.s32 128, 128
          %214 = vsyncadd [#allocation9], %s213
          %s216 = sshll.u32 [#allocation10], 4
          %s217 = int_to_ptr.vmem [resolvable:$true] %s216
          %219 = dma.hbm_to_vmem [thread:$0]  %s4, 128, %s217, [#allocation9]
        $region28: #{tpu_custom_call.1} parent=11 // pred_fallthru
          _
      $region12: #{tpu_custom_call.1} parent=5 // pred_fallthru
        _
      %p220 = scmp.lt.s32.totalorder %s19, 2
      // Predicated region
      $region29: #{tpu_custom_call.1} parent=5 // pred_check
        %p221 = pneg %p220
      $region30: #{tpu_custom_call.1} parent=5 // pred_check_branch
        %223 = sbr.rel (%p221) target = $region32
      $region31: #{tpu_custom_call.1} parent=5 // pred_region
        // Predicated region
        $region33: #{tpu_custom_call.1} parent=31 // pred_check
          %p224 = pneg %p39
        $region34: #{tpu_custom_call.1} parent=31 // pred_check_branch
          %226 = sbr.rel (%p224) target = $region36
        $region35: #{tpu_custom_call.1} parent=31 // pred_region
          %s227 = sand.u32 %s29, 1
          %s228 = scalar_lea.sflag [#allocation3], %s227
          %s229 = sand.u32 %s29, 1
          %s230 = smul.addr %s229, 128
          %s231 = scalar_lea.vmem [#allocation2], %s230
          %s232 = smul.u32 16, %s19
          %s234 = ssub.s32 2048, 2048
          %235 = vsyncadd %s228, %s234
          %s236 = smul.addr %s232, 128
          %s237 = scalar_lea.hbm %s0, %s236
          %s238 = sshll.u32 %s231, 4
          %s239 = int_to_ptr.vmem [resolvable:$true] %s238
          %244 = dma.hbm_to_vmem [thread:$0]  %s237, 2048, %s239, %s228, 128, 128, 8
        $region36: #{tpu_custom_call.1} parent=31 // pred_fallthru
          _
      $region32: #{tpu_custom_call.1} parent=5 // pred_fallthru
        _
      %p245 = scmp.le.s32.totalorder 1, %s19
      %p246 = scmp.lt.s32.totalorder %s19, 3
      %p247 = pnand %p245, %p246
      %p248 = pneg %p247
      // Predicated region
      $region37: #{tpu_custom_call.1} parent=5 // pred_check
        _
      $region38: #{tpu_custom_call.1} parent=5 // pred_check_branch
        %250 = sbr.rel (%p247) target = $region40
      $region39: #{tpu_custom_call.1} parent=5 // pred_region
        %s251 = ssub.s32 %s19, 1
        %s252 = sand.u32 %s32, 1
        %s253 = scalar_lea.sflag [#allocation3], %s252
        %s254 = sand.u32 %s32, 1
        %s255 = smul.addr %s254, 128
        %s256 = scalar_lea.vmem [#allocation2], %s255
        // Predicated region
        $region41: #{tpu_custom_call.1} parent=39 // pred_check
          %p257 = pneg %p45
        $region42: #{tpu_custom_call.1} parent=39 // pred_check_branch
          %259 = sbr.rel (%p257) target = $region44
        $region43: #{tpu_custom_call.1} parent=39 // pred_region
          %260 = dma.done %s253, 2048
        $region44: #{tpu_custom_call.1} parent=39 // pred_fallthru
          _
        // Predicated region
        $region45: #{tpu_custom_call.1} parent=39 // pred_check
          %p261 = pneg %p66
        $region46: #{tpu_custom_call.1} parent=39 // pred_check_branch
          %263 = sbr.rel (%p261) target = $region48
        $region47: #{tpu_custom_call.1} parent=39 // pred_region
          %264 = dma.done [#allocation6], 2048
        $region48: #{tpu_custom_call.1} parent=39 // pred_fallthru
          _
        // Predicated region
        $region49: #{tpu_custom_call.1} parent=39 // pred_check
          %p265 = pneg %p87
        $region50: #{tpu_custom_call.1} parent=39 // pred_check_branch
          %267 = sbr.rel (%p265) target = $region52
        $region51: #{tpu_custom_call.1} parent=39 // pred_region
          %268 = dma.done [#allocation6], 4096
        $region52: #{tpu_custom_call.1} parent=39 // pred_fallthru
          _
        // Predicated region
        $region53: #{tpu_custom_call.1} parent=39 // pred_check
          %p269 = pneg %p108
        $region54: #{tpu_custom_call.1} parent=39 // pred_check_branch
          %271 = sbr.rel (%p269) target = $region56
        $region55: #{tpu_custom_call.1} parent=39 // pred_region
          %272 = dma.done [#allocation9], 2048
        $region56: #{tpu_custom_call.1} parent=39 // pred_fallthru
          _
        // Predicated region
        $region57: #{tpu_custom_call.1} parent=39 // pred_check
          %p273 = pneg %p129
        $region58: #{tpu_custom_call.1} parent=39 // pred_check_branch
          %275 = sbr.rel (%p273) target = $region60
        $region59: #{tpu_custom_call.1} parent=39 // pred_region
          %276 = dma.done [#allocation9], 128
        $region60: #{tpu_custom_call.1} parent=39 // pred_fallthru
          _
        %s277 = sand.u32 %s32, 1
        %s278 = scalar_lea.sflag [#allocation3], %s277
        %s279 = sand.u32 %s32, 1
        %s280 = smul.addr %s279, 128
        %s281 = scalar_lea.vmem [#allocation2], %s280
        %p282 = pneg %p45
        %p283 = pneg %p42
        %p284 = pneg %p66
        %p285 = pneg %p63
        %p286 = pneg %p87
        %p287 = pneg %p84
        %p288 = pneg %p108
        %p289 = pneg %p105
        %p290 = pneg %p129
        %p291 = pneg %p126
        %p292 = pneg %p155
        %p293 = pneg %p152
        %s294 = sand.u32 %s142, 1
        %s295 = scalar_lea.sflag [#allocation4], %s294
        %s296 = sand.u32 %s142, 1
        %s297 = smul.addr %s296, 128
        %s298 = scalar_lea.vmem [#allocation11], %s297
        %s299 = smul.u32 16, %s24
        %s300 = smul.u32 16, %s24
        %v302 = vld [vmem:[%s256] sm:$0xff]
        %v303 = vld [vmem:[%s256 + $0x8] sm:$0xff]
        %v304 = vld [vmem:[%s256 + $0x10] sm:$0xff]
        %v305 = vld [vmem:[%s256 + $0x18] sm:$0xff]
        %v306 = vld [vmem:[%s256 + $0x20] sm:$0xff]
        %v307 = vld [vmem:[%s256 + $0x28] sm:$0xff]
        %v308 = vld [vmem:[%s256 + $0x30] sm:$0xff]
        %v309 = vld [vmem:[%s256 + $0x38] sm:$0xff]
        %v310 = vld [vmem:[%s256 + $0x40] sm:$0xff]
        %v311 = vld [vmem:[%s256 + $0x48] sm:$0xff]
        %v312 = vld [vmem:[%s256 + $0x50] sm:$0xff]
        %v313 = vld [vmem:[%s256 + $0x58] sm:$0xff]
        %v314 = vld [vmem:[%s256 + $0x60] sm:$0xff]
        %v315 = vld [vmem:[%s256 + $0x68] sm:$0xff]
        %v316 = vld [vmem:[%s256 + $0x70] sm:$0xff]
        %v317 = vld [vmem:[%s256 + $0x78] sm:$0xff]
        %v318 = vpack.c.bf16 %v303, %v302
        %v319 = vpack.c.bf16 %v305, %v304
        %v320 = vpack.c.bf16 %v307, %v306
        %v321 = vpack.c.bf16 %v309, %v308
        %v322 = vpack.c.bf16 %v311, %v310
        %v323 = vpack.c.bf16 %v313, %v312
        %v324 = vpack.c.bf16 %v315, %v314
        %v325 = vpack.c.bf16 %v317, %v316
        %v326 = vld [vmem:[#allocation5] sm:$0xff]
        %v327 = vld [vmem:[#allocation5 + $0x8] sm:$0xff]
        %v328 = vld [vmem:[#allocation5 + $0x10] sm:$0xff]
        %v329 = vld [vmem:[#allocation5 + $0x18] sm:$0xff]
        %v330 = vld [vmem:[#allocation5 + $0x20] sm:$0xff]
        %v331 = vld [vmem:[#allocation5 + $0x28] sm:$0xff]
        %v332 = vld [vmem:[#allocation5 + $0x30] sm:$0xff]
        %v333 = vld [vmem:[#allocation5 + $0x38] sm:$0xff]
        %v334 = vld [vmem:[#allocation5 + $0x40] sm:$0xff]
        %v335 = vld [vmem:[#allocation5 + $0x48] sm:$0xff]
        %v336 = vld [vmem:[#allocation5 + $0x50] sm:$0xff]
        %v337 = vld [vmem:[#allocation5 + $0x58] sm:$0xff]
        %v338 = vld [vmem:[#allocation5 + $0x60] sm:$0xff]
        %v339 = vld [vmem:[#allocation5 + $0x68] sm:$0xff]
        %v340 = vld [vmem:[#allocation5 + $0x70] sm:$0xff]
        %v341 = vld [vmem:[#allocation5 + $0x78] sm:$0xff]
        %v342 = vld [vmem:[#allocation10] ss:$4 sm:$0x3]
        %v344 = vlaneseq
        %v345 = vshrl.u32 %v344, 7
        %v346 = vsub.s32 0, %v345
        %v347 = vrot.slane %v342, %v346
        %v348 = vlaneseq
        %v349 = vshrl.u32 %v348, 7
        %v350 = vsub.s32 1, %v349
        %v351 = vrot.slane %v342, %v350
        %v370 = vunpack.c.l.b16 %v326
        %v371 = vunpack.c.h.b16 %v326
        %v372 = vunpack.c.l.b16 %v327
        %v373 = vunpack.c.h.b16 %v327
        %v374 = vunpack.c.l.b16 %v328
        %v375 = vunpack.c.h.b16 %v328
        %v376 = vunpack.c.l.b16 %v329
        %v377 = vunpack.c.h.b16 %v329
        %v378 = vunpack.c.l.b16 %v330
        %v379 = vunpack.c.h.b16 %v330
        %v380 = vunpack.c.l.b16 %v331
        %v381 = vunpack.c.h.b16 %v331
        %v382 = vunpack.c.l.b16 %v332
        %v383 = vunpack.c.h.b16 %v332
        %v384 = vunpack.c.l.b16 %v333
        %v385 = vunpack.c.h.b16 %v333
        %v386 = vunpack.c.l.b16 %v334
        %v387 = vunpack.c.h.b16 %v334
        %v388 = vunpack.c.l.b16 %v335
        %v389 = vunpack.c.h.b16 %v335
        %v390 = vunpack.c.l.b16 %v336
        %v391 = vunpack.c.h.b16 %v336
        %v392 = vunpack.c.l.b16 %v337
        %v393 = vunpack.c.h.b16 %v337
        %v394 = vunpack.c.l.b16 %v338
        %v395 = vunpack.c.h.b16 %v338
        %v396 = vunpack.c.l.b16 %v339
        %v397 = vunpack.c.h.b16 %v339
        %v398 = vunpack.c.l.b16 %v340
        %v399 = vunpack.c.h.b16 %v340
        %v400 = vunpack.c.l.b16 %v341
        %v401 = vunpack.c.h.b16 %v341
        %v402 = vpack.c.b16 %v372, %v370
        %v403 = vpack.c.b16 %v373, %v371
        %v404 = vpack.c.b16 %v376, %v374
        %v405 = vpack.c.b16 %v377, %v375
        %v406 = vpack.c.b16 %v380, %v378
        %v407 = vpack.c.b16 %v381, %v379
        %v408 = vpack.c.b16 %v384, %v382
        %v409 = vpack.c.b16 %v385, %v383
        %v410 = vpack.c.b16 %v388, %v386
        %v411 = vpack.c.b16 %v389, %v387
        %v412 = vpack.c.b16 %v392, %v390
        %v413 = vpack.c.b16 %v393, %v391
        %v414 = vpack.c.b16 %v396, %v394
        %v415 = vpack.c.b16 %v397, %v395
        %v416 = vpack.c.b16 %v400, %v398
        %v417 = vpack.c.b16 %v401, %v399
        %434 = vmatprep.subr.bf16.mxu0 %v403
        %435 = vmatpush1.bf16.msra.mxu0 %v402
        %436 = vmatprep.subr.bf16.mxu0 %v405
        %437 = vmatpush1.bf16.msra.mxu0 %v404
        %438 = vmatprep.subr.bf16.mxu0 %v407
        %439 = vmatpush1.bf16.msra.mxu0 %v406
        %440 = vmatprep.subr.bf16.mxu0 %v409
        %441 = vmatpush1.bf16.msra.mxu0 %v408
        %442 = vmatprep.subr.bf16.mxu0 %v411
        %443 = vmatpush1.bf16.msra.mxu0 %v410
        %444 = vmatprep.subr.bf16.mxu0 %v413
        %445 = vmatpush1.bf16.msra.mxu0 %v412
        %446 = vmatprep.subr.bf16.mxu0 %v415
        %447 = vmatpush1.bf16.msra.mxu0 %v414
        %448 = vmatprep.subr.bf16.mxu0 %v417
        %449 = vmatpush1.bf16.msra.mxu0 %v416
        %450 = vmatprep.subr.bf16.mxu0 0
        %451 = vmatpush1.bf16.msra.mxu0 0
        %452 = vmatprep.subr.bf16.mxu0 0
        %453 = vmatpush1.bf16.msra.mxu0 0
        %454 = vmatprep.subr.bf16.mxu0 0
        %455 = vmatpush1.bf16.msra.mxu0 0
        %456 = vmatprep.subr.bf16.mxu0 0
        %457 = vmatpush1.bf16.msra.mxu0 0
        %458 = vmatprep.subr.bf16.mxu0 0
        %459 = vmatpush1.bf16.msra.mxu0 0
        %460 = vmatprep.subr.bf16.mxu0 0
        %461 = vmatpush1.bf16.msra.mxu0 0
        %462 = vmatprep.subr.bf16.mxu0 0
        %463 = vmatpush1.bf16.msra.mxu0 0
        %464 = vmatprep.subr.bf16.mxu0 0
        %465 = vmatpush1.bf16.msra.mxu0 0
        %466 = vmatprep.mubr.bf16.mxu0 0
        %467 = vmatmul.mubr.bf16.gmra.mrb[0].mxu0 %v318
        %v468 = vpop.f32.mrb[0].mxu0
        %v469 = vadd.f32 %v347, %v468
        %v470 = vpop.f32.mrb[0].mxu0
        %v471 = vadd.f32 %v351, %v470
        %v472 = vpop.f32.mrb[0].mxu0
        %v473 = vadd.f32 %v347, %v472
        %v474 = vpop.f32.mrb[0].mxu0
        %v475 = vadd.f32 %v351, %v474
        %476 = vmatprep.mubr.bf16.mxu0 0
        %477 = vmatmul.mubr.bf16.gmra.mrb[0].mxu0 %v319
        %v478 = vpop.f32.mrb[0].mxu0
        %v479 = vadd.f32 %v347, %v478
        %v480 = vpop.f32.mrb[0].mxu0
        %v481 = vadd.f32 %v351, %v480
        %v482 = vpop.f32.mrb[0].mxu0
        %v483 = vadd.f32 %v347, %v482
        %v484 = vpop.f32.mrb[0].mxu0
        %v485 = vadd.f32 %v351, %v484
        %486 = vmatprep.mubr.bf16.mxu0 0
        %487 = vmatmul.mubr.bf16.gmra.mrb[0].mxu0 %v320
        %v488 = vpop.f32.mrb[0].mxu0
        %v489 = vadd.f32 %v347, %v488
        %v490 = vpop.f32.mrb[0].mxu0
        %v491 = vadd.f32 %v351, %v490
        %v492 = vpop.f32.mrb[0].mxu0
        %v493 = vadd.f32 %v347, %v492
        %v494 = vpop.f32.mrb[0].mxu0
        %v495 = vadd.f32 %v351, %v494
        %496 = vmatprep.mubr.bf16.mxu0 0
        %497 = vmatmul.mubr.bf16.gmra.mrb[0].mxu0 %v321
        %v498 = vpop.f32.mrb[0].mxu0
        %v499 = vadd.f32 %v347, %v498
        %v500 = vpop.f32.mrb[0].mxu0
        %v501 = vadd.f32 %v351, %v500
        %v502 = vpop.f32.mrb[0].mxu0
        %v503 = vadd.f32 %v347, %v502
        %v504 = vpop.f32.mrb[0].mxu0
        %v505 = vadd.f32 %v351, %v504
        %506 = vmatprep.mubr.bf16.mxu0 0
        %507 = vmatmul.mubr.bf16.gmra.mrb[0].mxu0 %v322
        %v508 = vpop.f32.mrb[0].mxu0
        %v509 = vadd.f32 %v347, %v508
        %v510 = vpop.f32.mrb[0].mxu0
        %v511 = vadd.f32 %v351, %v510
        %v512 = vpop.f32.mrb[0].mxu0
        %v513 = vadd.f32 %v347, %v512
        %v514 = vpop.f32.mrb[0].mxu0
        %v515 = vadd.f32 %v351, %v514
        %516 = vmatprep.mubr.bf16.mxu0 0
        %517 = vmatmul.mubr.bf16.gmra.mrb[0].mxu0 %v323
        %v518 = vpop.f32.mrb[0].mxu0
        %v519 = vadd.f32 %v347, %v518
        %v520 = vpop.f32.mrb[0].mxu0
        %v521 = vadd.f32 %v351, %v520
        %v522 = vpop.f32.mrb[0].mxu0
        %v523 = vadd.f32 %v347, %v522
        %v524 = vpop.f32.mrb[0].mxu0
        %v525 = vadd.f32 %v351, %v524
        %526 = vmatprep.mubr.bf16.mxu0 0
        %527 = vmatmul.mubr.bf16.gmra.mrb[0].mxu0 %v324
        %v528 = vpop.f32.mrb[0].mxu0
        %v529 = vadd.f32 %v347, %v528
        %v530 = vpop.f32.mrb[0].mxu0
        %v531 = vadd.f32 %v351, %v530
        %v532 = vpop.f32.mrb[0].mxu0
        %v533 = vadd.f32 %v347, %v532
        %v534 = vpop.f32.mrb[0].mxu0
        %v535 = vadd.f32 %v351, %v534
        %536 = vmatprep.mubr.bf16.mxu0 0
        %537 = vmatmul.mubr.bf16.gmra.mrb[0].mxu0 %v325
        %v538 = vpop.f32.mrb[0].mxu0
        %v539 = vadd.f32 %v347, %v538
        %v540 = vpop.f32.mrb[0].mxu0
        %v541 = vadd.f32 %v351, %v540
        %v542 = vpop.f32.mrb[0].mxu0
        %v543 = vadd.f32 %v347, %v542
        %v544 = vpop.f32.mrb[0].mxu0
        %v545 = vadd.f32 %v351, %v544
        %546 = vdwg.mxu0
        %v547 = vmax.f32 %v469, 0.0
        %v548 = vmax.f32 %v471, 0.0
        %v549 = vmax.f32 %v473, 0.0
        %v550 = vmax.f32 %v475, 0.0
        %v551 = vmax.f32 %v479, 0.0
        %v552 = vmax.f32 %v481, 0.0
        %v553 = vmax.f32 %v483, 0.0
        %v554 = vmax.f32 %v485, 0.0
        %v555 = vmax.f32 %v489, 0.0
        %v556 = vmax.f32 %v491, 0.0
        %v557 = vmax.f32 %v493, 0.0
        %v558 = vmax.f32 %v495, 0.0
        %v559 = vmax.f32 %v499, 0.0
        %v560 = vmax.f32 %v501, 0.0
        %v561 = vmax.f32 %v503, 0.0
        %v562 = vmax.f32 %v505, 0.0
        %v563 = vmax.f32 %v509, 0.0
        %v564 = vmax.f32 %v511, 0.0
        %v565 = vmax.f32 %v513, 0.0
        %v566 = vmax.f32 %v515, 0.0
        %v567 = vmax.f32 %v519, 0.0
        %v568 = vmax.f32 %v521, 0.0
        %v569 = vmax.f32 %v523, 0.0
        %v570 = vmax.f32 %v525, 0.0
        %v571 = vmax.f32 %v529, 0.0
        %v572 = vmax.f32 %v531, 0.0
        %v573 = vmax.f32 %v533, 0.0
        %v574 = vmax.f32 %v535, 0.0
        %v575 = vmax.f32 %v539, 0.0
        %v576 = vmax.f32 %v541, 0.0
        %v577 = vmax.f32 %v543, 0.0
        %v578 = vmax.f32 %v545, 0.0
        %v579 = vpack.c.bf16 %v549, %v547
        %v580 = vpack.c.bf16 %v550, %v548
        %v581 = vpack.c.bf16 %v553, %v551
        %v582 = vpack.c.bf16 %v554, %v552
        %v583 = vpack.c.bf16 %v557, %v555
        %v584 = vpack.c.bf16 %v558, %v556
        %v585 = vpack.c.bf16 %v561, %v559
        %v586 = vpack.c.bf16 %v562, %v560
        %v587 = vpack.c.bf16 %v565, %v563
        %v588 = vpack.c.bf16 %v566, %v564
        %v589 = vpack.c.bf16 %v569, %v567
        %v590 = vpack.c.bf16 %v570, %v568
        %v591 = vpack.c.bf16 %v573, %v571
        %v592 = vpack.c.bf16 %v574, %v572
        %v593 = vpack.c.bf16 %v577, %v575
        %v594 = vpack.c.bf16 %v578, %v576
        %v595 = vld [vmem:[#allocation7] sm:$0xff]
        %v596 = vld [vmem:[#allocation7 + $0x8] sm:$0xff]
        %v597 = vld [vmem:[#allocation7 + $0x10] sm:$0xff]
        %v598 = vld [vmem:[#allocation7 + $0x18] sm:$0xff]
        %v599 = vld [vmem:[#allocation7 + $0x20] sm:$0xff]
        %v600 = vld [vmem:[#allocation7 + $0x28] sm:$0xff]
        %v601 = vld [vmem:[#allocation7 + $0x30] sm:$0xff]
        %v602 = vld [vmem:[#allocation7 + $0x38] sm:$0xff]
        %v603 = vld [vmem:[#allocation7 + $0x40] sm:$0xff]
        %v604 = vld [vmem:[#allocation7 + $0x48] sm:$0xff]
        %v605 = vld [vmem:[#allocation7 + $0x50] sm:$0xff]
        %v606 = vld [vmem:[#allocation7 + $0x58] sm:$0xff]
        %v607 = vld [vmem:[#allocation7 + $0x60] sm:$0xff]
        %v608 = vld [vmem:[#allocation7 + $0x68] sm:$0xff]
        %v609 = vld [vmem:[#allocation7 + $0x70] sm:$0xff]
        %v610 = vld [vmem:[#allocation7 + $0x78] sm:$0xff]
        %v611 = vld [vmem:[#allocation7 + $0x80] sm:$0xff]
        %v612 = vld [vmem:[#allocation7 + $0x88] sm:$0xff]
        %v613 = vld [vmem:[#allocation7 + $0x90] sm:$0xff]
        %v614 = vld [vmem:[#allocation7 + $0x98] sm:$0xff]
        %v615 = vld [vmem:[#allocation7 + $0xa0] sm:$0xff]
        %v616 = vld [vmem:[#allocation7 + $0xa8] sm:$0xff]
        %v617 = vld [vmem:[#allocation7 + $0xb0] sm:$0xff]
        %v618 = vld [vmem:[#allocation7 + $0xb8] sm:$0xff]
        %v619 = vld [vmem:[#allocation7 + $0xc0] sm:$0xff]
        %v620 = vld [vmem:[#allocation7 + $0xc8] sm:$0xff]
        %v621 = vld [vmem:[#allocation7 + $0xd0] sm:$0xff]
        %v622 = vld [vmem:[#allocation7 + $0xd8] sm:$0xff]
        %v623 = vld [vmem:[#allocation7 + $0xe0] sm:$0xff]
        %v624 = vld [vmem:[#allocation7 + $0xe8] sm:$0xff]
        %v625 = vld [vmem:[#allocation7 + $0xf0] sm:$0xff]
        %v626 = vld [vmem:[#allocation7 + $0xf8] sm:$0xff]
        %s627 = scalar_lea.vmem [#allocation10], 1
        %v628 = vld [vmem:[%s627] ss:$4 sm:$0x3]
        %v630 = vlaneseq
        %v631 = vshrl.u32 %v630, 7
        %v632 = vsub.s32 0, %v631
        %v633 = vrot.slane %v628, %v632
        %v634 = vlaneseq
        %v635 = vshrl.u32 %v634, 7
        %v636 = vsub.s32 1, %v635
        %v637 = vrot.slane %v628, %v636
        %v672 = vunpack.c.l.b16 %v595
        %v673 = vunpack.c.h.b16 %v595
        %v674 = vunpack.c.l.b16 %v596
        %v675 = vunpack.c.h.b16 %v596
        %v676 = vunpack.c.l.b16 %v597
        %v677 = vunpack.c.h.b16 %v597
        %v678 = vunpack.c.l.b16 %v598
        %v679 = vunpack.c.h.b16 %v598
        %v680 = vunpack.c.l.b16 %v599
        %v681 = vunpack.c.h.b16 %v599
        %v682 = vunpack.c.l.b16 %v600
        %v683 = vunpack.c.h.b16 %v600
        %v684 = vunpack.c.l.b16 %v601
        %v685 = vunpack.c.h.b16 %v601
        %v686 = vunpack.c.l.b16 %v602
        %v687 = vunpack.c.h.b16 %v602
        %v688 = vunpack.c.l.b16 %v603
        %v689 = vunpack.c.h.b16 %v603
        %v690 = vunpack.c.l.b16 %v604
        %v691 = vunpack.c.h.b16 %v604
        %v692 = vunpack.c.l.b16 %v605
        %v693 = vunpack.c.h.b16 %v605
        %v694 = vunpack.c.l.b16 %v606
        %v695 = vunpack.c.h.b16 %v606
        %v696 = vunpack.c.l.b16 %v607
        %v697 = vunpack.c.h.b16 %v607
        %v698 = vunpack.c.l.b16 %v608
        %v699 = vunpack.c.h.b16 %v608
        %v700 = vunpack.c.l.b16 %v609
        %v701 = vunpack.c.h.b16 %v609
        %v702 = vunpack.c.l.b16 %v610
        %v703 = vunpack.c.h.b16 %v610
        %v704 = vunpack.c.l.b16 %v611
        %v705 = vunpack.c.h.b16 %v611
        %v706 = vunpack.c.l.b16 %v612
        %v707 = vunpack.c.h.b16 %v612
        %v708 = vunpack.c.l.b16 %v613
        %v709 = vunpack.c.h.b16 %v613
        %v710 = vunpack.c.l.b16 %v614
        %v711 = vunpack.c.h.b16 %v614
        %v712 = vunpack.c.l.b16 %v615
        %v713 = vunpack.c.h.b16 %v615
        %v714 = vunpack.c.l.b16 %v616
        %v715 = vunpack.c.h.b16 %v616
        %v716 = vunpack.c.l.b16 %v617
        %v717 = vunpack.c.h.b16 %v617
        %v718 = vunpack.c.l.b16 %v618
        %v719 = vunpack.c.h.b16 %v618
        %v720 = vunpack.c.l.b16 %v619
        %v721 = vunpack.c.h.b16 %v619
        %v722 = vunpack.c.l.b16 %v620
        %v723 = vunpack.c.h.b16 %v620
        %v724 = vunpack.c.l.b16 %v621
        %v725 = vunpack.c.h.b16 %v621
        %v726 = vunpack.c.l.b16 %v622
        %v727 = vunpack.c.h.b16 %v622
        %v728 = vunpack.c.l.b16 %v623
        %v729 = vunpack.c.h.b16 %v623
        %v730 = vunpack.c.l.b16 %v624
        %v731 = vunpack.c.h.b16 %v624
        %v732 = vunpack.c.l.b16 %v625
        %v733 = vunpack.c.h.b16 %v625
        %v734 = vunpack.c.l.b16 %v626
        %v735 = vunpack.c.h.b16 %v626
        %v736 = vpack.c.b16 %v674, %v672
        %v737 = vpack.c.b16 %v675, %v673
        %v738 = vpack.c.b16 %v678, %v676
        %v739 = vpack.c.b16 %v679, %v677
        %v740 = vpack.c.b16 %v682, %v680
        %v741 = vpack.c.b16 %v683, %v681
        %v742 = vpack.c.b16 %v686, %v684
        %v743 = vpack.c.b16 %v687, %v685
        %v744 = vpack.c.b16 %v690, %v688
        %v745 = vpack.c.b16 %v691, %v689
        %v746 = vpack.c.b16 %v694, %v692
        %v747 = vpack.c.b16 %v695, %v693
        %v748 = vpack.c.b16 %v698, %v696
        %v749 = vpack.c.b16 %v699, %v697
        %v750 = vpack.c.b16 %v702, %v700
        %v751 = vpack.c.b16 %v703, %v701
        %v752 = vpack.c.b16 %v706, %v704
        %v753 = vpack.c.b16 %v707, %v705
        %v754 = vpack.c.b16 %v710, %v708
        %v755 = vpack.c.b16 %v711, %v709
        %v756 = vpack.c.b16 %v714, %v712
        %v757 = vpack.c.b16 %v715, %v713
        %v758 = vpack.c.b16 %v718, %v716
        %v759 = vpack.c.b16 %v719, %v717
        %v760 = vpack.c.b16 %v722, %v720
        %v761 = vpack.c.b16 %v723, %v721
        %v762 = vpack.c.b16 %v726, %v724
        %v763 = vpack.c.b16 %v727, %v725
        %v764 = vpack.c.b16 %v730, %v728
        %v765 = vpack.c.b16 %v731, %v729
        %v766 = vpack.c.b16 %v734, %v732
        %v767 = vpack.c.b16 %v735, %v733
        %800 = vmatprep.subr.bf16.mxu0 %v737
        %801 = vmatpush1.bf16.msra.mxu0 %v736
        %802 = vmatprep.subr.bf16.mxu0 %v739
        %803 = vmatpush1.bf16.msra.mxu0 %v738
        %804 = vmatprep.subr.bf16.mxu0 %v741
        %805 = vmatpush1.bf16.msra.mxu0 %v740
        %806 = vmatprep.subr.bf16.mxu0 %v743
        %807 = vmatpush1.bf16.msra.mxu0 %v742
        %808 = vmatprep.subr.bf16.mxu0 %v745
        %809 = vmatpush1.bf16.msra.mxu0 %v744
        %810 = vmatprep.subr.bf16.mxu0 %v747
        %811 = vmatpush1.bf16.msra.mxu0 %v746
        %812 = vmatprep.subr.bf16.mxu0 %v749
        %813 = vmatpush1.bf16.msra.mxu0 %v748
        %814 = vmatprep.subr.bf16.mxu0 %v751
        %815 = vmatpush1.bf16.msra.mxu0 %v750
        %816 = vmatprep.subr.bf16.mxu0 %v753
        %817 = vmatpush1.bf16.msra.mxu0 %v752
        %818 = vmatprep.subr.bf16.mxu0 %v755
        %819 = vmatpush1.bf16.msra.mxu0 %v754
        %820 = vmatprep.subr.bf16.mxu0 %v757
        %821 = vmatpush1.bf16.msra.mxu0 %v756
        %822 = vmatprep.subr.bf16.mxu0 %v759
        %823 = vmatpush1.bf16.msra.mxu0 %v758
        %824 = vmatprep.subr.bf16.mxu0 %v761
        %825 = vmatpush1.bf16.msra.mxu0 %v760
        %826 = vmatprep.subr.bf16.mxu0 %v763
        %827 = vmatpush1.bf16.msra.mxu0 %v762
        %828 = vmatprep.subr.bf16.mxu0 %v765
        %829 = vmatpush1.bf16.msra.mxu0 %v764
        %830 = vmatprep.subr.bf16.mxu0 %v767
        %831 = vmatpush1.bf16.msra.mxu0 %v766
        %832 = vmatprep.mubr.bf16.mxu0 %v580
        %833 = vmatmul.mubr.bf16.gmra.mrb[0].mxu0 %v579
        %v834 = vpop.f32.mrb[0].mxu0
        %v835 = vadd.f32 %v633, %v834
        %v836 = vpop.f32.mrb[0].mxu0
        %v837 = vadd.f32 %v637, %v836
        %v838 = vpop.f32.mrb[0].mxu0
        %v839 = vadd.f32 %v633, %v838
        %v840 = vpop.f32.mrb[0].mxu0
        %v841 = vadd.f32 %v637, %v840
        %842 = vmatprep.mubr.bf16.mxu0 %v582
        %843 = vmatmul.mubr.bf16.gmra.mrb[0].mxu0 %v581
        %v844 = vpop.f32.mrb[0].mxu0
        %v845 = vadd.f32 %v633, %v844
        %v846 = vpop.f32.mrb[0].mxu0
        %v847 = vadd.f32 %v637, %v846
        %v848 = vpop.f32.mrb[0].mxu0
        %v849 = vadd.f32 %v633, %v848
        %v850 = vpop.f32.mrb[0].mxu0
        %v851 = vadd.f32 %v637, %v850
        %852 = vmatprep.mubr.bf16.mxu0 %v584
        %853 = vmatmul.mubr.bf16.gmra.mrb[0].mxu0 %v583
        %v854 = vpop.f32.mrb[0].mxu0
        %v855 = vadd.f32 %v633, %v854
        %v856 = vpop.f32.mrb[0].mxu0
        %v857 = vadd.f32 %v637, %v856
        %v858 = vpop.f32.mrb[0].mxu0
        %v859 = vadd.f32 %v633, %v858
        %v860 = vpop.f32.mrb[0].mxu0
        %v861 = vadd.f32 %v637, %v860
        %862 = vmatprep.mubr.bf16.mxu0 %v586
        %863 = vmatmul.mubr.bf16.gmra.mrb[0].mxu0 %v585
        %v864 = vpop.f32.mrb[0].mxu0
        %v865 = vadd.f32 %v633, %v864
        %v866 = vpop.f32.mrb[0].mxu0
        %v867 = vadd.f32 %v637, %v866
        %v868 = vpop.f32.mrb[0].mxu0
        %v869 = vadd.f32 %v633, %v868
        %v870 = vpop.f32.mrb[0].mxu0
        %v871 = vadd.f32 %v637, %v870
        %872 = vmatprep.mubr.bf16.mxu0 %v588
        %873 = vmatmul.mubr.bf16.gmra.mrb[0].mxu0 %v587
        %v874 = vpop.f32.mrb[0].mxu0
        %v875 = vadd.f32 %v633, %v874
        %v876 = vpop.f32.mrb[0].mxu0
        %v877 = vadd.f32 %v637, %v876
        %v878 = vpop.f32.mrb[0].mxu0
        %v879 = vadd.f32 %v633, %v878
        %v880 = vpop.f32.mrb[0].mxu0
        %v881 = vadd.f32 %v637, %v880
        %882 = vmatprep.mubr.bf16.mxu0 %v590
        %883 = vmatmul.mubr.bf16.gmra.mrb[0].mxu0 %v589
        %v884 = vpop.f32.mrb[0].mxu0
        %v885 = vadd.f32 %v633, %v884
        %v886 = vpop.f32.mrb[0].mxu0
        %v887 = vadd.f32 %v637, %v886
        %v888 = vpop.f32.mrb[0].mxu0
        %v889 = vadd.f32 %v633, %v888
        %v890 = vpop.f32.mrb[0].mxu0
        %v891 = vadd.f32 %v637, %v890
        %892 = vmatprep.mubr.bf16.mxu0 %v592
        %893 = vmatmul.mubr.bf16.gmra.mrb[0].mxu0 %v591
        %v894 = vpop.f32.mrb[0].mxu0
        %v895 = vadd.f32 %v633, %v894
        %v896 = vpop.f32.mrb[0].mxu0
        %v897 = vadd.f32 %v637, %v896
        %v898 = vpop.f32.mrb[0].mxu0
        %v899 = vadd.f32 %v633, %v898
        %v900 = vpop.f32.mrb[0].mxu0
        %v901 = vadd.f32 %v637, %v900
        %902 = vmatprep.mubr.bf16.mxu0 %v594
        %903 = vmatmul.mubr.bf16.gmra.mrb[0].mxu0 %v593
        %v904 = vpop.f32.mrb[0].mxu0
        %v905 = vadd.f32 %v633, %v904
        %v906 = vpop.f32.mrb[0].mxu0
        %v907 = vadd.f32 %v637, %v906
        %v908 = vpop.f32.mrb[0].mxu0
        %v909 = vadd.f32 %v633, %v908
        %v910 = vpop.f32.mrb[0].mxu0
        %v911 = vadd.f32 %v637, %v910
        %912 = vdwg.mxu0
        %v913 = vmax.f32 %v835, 0.0
        %v914 = vmax.f32 %v837, 0.0
        %v915 = vmax.f32 %v839, 0.0
        %v916 = vmax.f32 %v841, 0.0
        %v917 = vmax.f32 %v845, 0.0
        %v918 = vmax.f32 %v847, 0.0
        %v919 = vmax.f32 %v849, 0.0
        %v920 = vmax.f32 %v851, 0.0
        %v921 = vmax.f32 %v855, 0.0
        %v922 = vmax.f32 %v857, 0.0
        %v923 = vmax.f32 %v859, 0.0
        %v924 = vmax.f32 %v861, 0.0
        %v925 = vmax.f32 %v865, 0.0
        %v926 = vmax.f32 %v867, 0.0
        %v927 = vmax.f32 %v869, 0.0
        %v928 = vmax.f32 %v871, 0.0
        %v929 = vmax.f32 %v875, 0.0
        %v930 = vmax.f32 %v877, 0.0
        %v931 = vmax.f32 %v879, 0.0
        %v932 = vmax.f32 %v881, 0.0
        %v933 = vmax.f32 %v885, 0.0
        %v934 = vmax.f32 %v887, 0.0
        %v935 = vmax.f32 %v889, 0.0
        %v936 = vmax.f32 %v891, 0.0
        %v937 = vmax.f32 %v895, 0.0
        %v938 = vmax.f32 %v897, 0.0
        %v939 = vmax.f32 %v899, 0.0
        %v940 = vmax.f32 %v901, 0.0
        %v941 = vmax.f32 %v905, 0.0
        %v942 = vmax.f32 %v907, 0.0
        %v943 = vmax.f32 %v909, 0.0
        %v944 = vmax.f32 %v911, 0.0
        %v945 = vpack.c.bf16 %v915, %v913
        %v946 = vpack.c.bf16 %v916, %v914
        %v947 = vpack.c.bf16 %v919, %v917
        %v948 = vpack.c.bf16 %v920, %v918
        %v949 = vpack.c.bf16 %v923, %v921
        %v950 = vpack.c.bf16 %v924, %v922
        %v951 = vpack.c.bf16 %v927, %v925
        %v952 = vpack.c.bf16 %v928, %v926
        %v953 = vpack.c.bf16 %v931, %v929
        %v954 = vpack.c.bf16 %v932, %v930
        %v955 = vpack.c.bf16 %v935, %v933
        %v956 = vpack.c.bf16 %v936, %v934
        %v957 = vpack.c.bf16 %v939, %v937
        %v958 = vpack.c.bf16 %v940, %v938
        %v959 = vpack.c.bf16 %v943, %v941
        %v960 = vpack.c.bf16 %v944, %v942
        %v961 = vld [vmem:[#allocation8] sm:$0xf]
        %v962 = vld [vmem:[#allocation8 + $0x4] sm:$0xf]
        %v963 = vld [vmem:[#allocation8 + $0x8] sm:$0xf]
        %v964 = vld [vmem:[#allocation8 + $0xc] sm:$0xf]
        %v965 = vld [vmem:[#allocation8 + $0x10] sm:$0xf]
        %v966 = vld [vmem:[#allocation8 + $0x14] sm:$0xf]
        %v967 = vld [vmem:[#allocation8 + $0x18] sm:$0xf]
        %v968 = vld [vmem:[#allocation8 + $0x1c] sm:$0xf]
        %v969 = vld [vmem:[#allocation8 + $0x20] sm:$0xf]
        %v970 = vld [vmem:[#allocation8 + $0x24] sm:$0xf]
        %v971 = vld [vmem:[#allocation8 + $0x28] sm:$0xf]
        %v972 = vld [vmem:[#allocation8 + $0x2c] sm:$0xf]
        %v973 = vld [vmem:[#allocation8 + $0x30] sm:$0xf]
        %v974 = vld [vmem:[#allocation8 + $0x34] sm:$0xf]
        %v975 = vld [vmem:[#allocation8 + $0x38] sm:$0xf]
        %v976 = vld [vmem:[#allocation8 + $0x3c] sm:$0xf]
        %v977 = vld [vmem:[#allocation8 + $0x40] sm:$0xf]
        %v978 = vld [vmem:[#allocation8 + $0x44] sm:$0xf]
        %v979 = vld [vmem:[#allocation8 + $0x48] sm:$0xf]
        %v980 = vld [vmem:[#allocation8 + $0x4c] sm:$0xf]
        %v981 = vld [vmem:[#allocation8 + $0x50] sm:$0xf]
        %v982 = vld [vmem:[#allocation8 + $0x54] sm:$0xf]
        %v983 = vld [vmem:[#allocation8 + $0x58] sm:$0xf]
        %v984 = vld [vmem:[#allocation8 + $0x5c] sm:$0xf]
        %v985 = vld [vmem:[#allocation8 + $0x60] sm:$0xf]
        %v986 = vld [vmem:[#allocation8 + $0x64] sm:$0xf]
        %v987 = vld [vmem:[#allocation8 + $0x68] sm:$0xf]
        %v988 = vld [vmem:[#allocation8 + $0x6c] sm:$0xf]
        %v989 = vld [vmem:[#allocation8 + $0x70] sm:$0xf]
        %v990 = vld [vmem:[#allocation8 + $0x74] sm:$0xf]
        %v991 = vld [vmem:[#allocation8 + $0x78] sm:$0xf]
        %v992 = vld [vmem:[#allocation8 + $0x7c] sm:$0xf]
        %v993 = vld [vmem:[#allocation10 + $0x2] sm:$0x1]
        %v994 = vlaneseq
        %v995 = vshrl.u32 %v994, 7
        %v996 = vsub.s32 0, %v995
        %v997 = vrot.slane %v993, %v996
        %v1030 = vunpack.c.l.b16 %v961
        %v1031 = vunpack.c.l.b16 %v962
        %v1032 = vunpack.c.l.b16 %v963
        %v1033 = vunpack.c.l.b16 %v964
        %v1034 = vunpack.c.l.b16 %v965
        %v1035 = vunpack.c.l.b16 %v966
        %v1036 = vunpack.c.l.b16 %v967
        %v1037 = vunpack.c.l.b16 %v968
        %v1038 = vunpack.c.l.b16 %v969
        %v1039 = vunpack.c.l.b16 %v970
        %v1040 = vunpack.c.l.b16 %v971
        %v1041 = vunpack.c.l.b16 %v972
        %v1042 = vunpack.c.l.b16 %v973
        %v1043 = vunpack.c.l.b16 %v974
        %v1044 = vunpack.c.l.b16 %v975
        %v1045 = vunpack.c.l.b16 %v976
        %v1046 = vunpack.c.l.b16 %v977
        %v1047 = vunpack.c.l.b16 %v978
        %v1048 = vunpack.c.l.b16 %v979
        %v1049 = vunpack.c.l.b16 %v980
        %v1050 = vunpack.c.l.b16 %v981
        %v1051 = vunpack.c.l.b16 %v982
        %v1052 = vunpack.c.l.b16 %v983
        %v1053 = vunpack.c.l.b16 %v984
        %v1054 = vunpack.c.l.b16 %v985
        %v1055 = vunpack.c.l.b16 %v986
        %v1056 = vunpack.c.l.b16 %v987
        %v1057 = vunpack.c.l.b16 %v988
        %v1058 = vunpack.c.l.b16 %v989
        %v1059 = vunpack.c.l.b16 %v990
        %v1060 = vunpack.c.l.b16 %v991
        %v1061 = vunpack.c.l.b16 %v992
        %v1062 = vpack.c.b16 %v1031, %v1030
        %v1063 = vpack.c.b16 %v1033, %v1032
        %v1064 = vpack.c.b16 %v1035, %v1034
        %v1065 = vpack.c.b16 %v1037, %v1036
        %v1066 = vpack.c.b16 %v1039, %v1038
        %v1067 = vpack.c.b16 %v1041, %v1040
        %v1068 = vpack.c.b16 %v1043, %v1042
        %v1069 = vpack.c.b16 %v1045, %v1044
        %v1070 = vpack.c.b16 %v1047, %v1046
        %v1071 = vpack.c.b16 %v1049, %v1048
        %v1072 = vpack.c.b16 %v1051, %v1050
        %v1073 = vpack.c.b16 %v1053, %v1052
        %v1074 = vpack.c.b16 %v1055, %v1054
        %v1075 = vpack.c.b16 %v1057, %v1056
        %v1076 = vpack.c.b16 %v1059, %v1058
        %v1077 = vpack.c.b16 %v1061, %v1060
        %1094 = vmatprep.subr.bf16.mxu0 0
        %1095 = vmatpush1.bf16.msra.mxu0 %v1062
        %1096 = vmatprep.subr.bf16.mxu0 0
        %1097 = vmatpush1.bf16.msra.mxu0 %v1063
        %1098 = vmatprep.subr.bf16.mxu0 0
        %1099 = vmatpush1.bf16.msra.mxu0 %v1064
        %1100 = vmatprep.subr.bf16.mxu0 0
        %1101 = vmatpush1.bf16.msra.mxu0 %v1065
        %1102 = vmatprep.subr.bf16.mxu0 0
        %1103 = vmatpush1.bf16.msra.mxu0 %v1066
        %1104 = vmatprep.subr.bf16.mxu0 0
        %1105 = vmatpush1.bf16.msra.mxu0 %v1067
        %1106 = vmatprep.subr.bf16.mxu0 0
        %1107 = vmatpush1.bf16.msra.mxu0 %v1068
        %1108 = vmatprep.subr.bf16.mxu0 0
        %1109 = vmatpush1.bf16.msra.mxu0 %v1069
        %1110 = vmatprep.subr.bf16.mxu0 0
        %1111 = vmatpush1.bf16.msra.mxu0 %v1070
        %1112 = vmatprep.subr.bf16.mxu0 0
        %1113 = vmatpush1.bf16.msra.mxu0 %v1071
        %1114 = vmatprep.subr.bf16.mxu0 0
        %1115 = vmatpush1.bf16.msra.mxu0 %v1072
        %1116 = vmatprep.subr.bf16.mxu0 0
        %1117 = vmatpush1.bf16.msra.mxu0 %v1073
        %1118 = vmatprep.subr.bf16.mxu0 0
        %1119 = vmatpush1.bf16.msra.mxu0 %v1074
        %1120 = vmatprep.subr.bf16.mxu0 0
        %1121 = vmatpush1.bf16.msra.mxu0 %v1075
        %1122 = vmatprep.subr.bf16.mxu0 0
        %1123 = vmatpush1.bf16.msra.mxu0 %v1076
        %1124 = vmatprep.subr.bf16.mxu0 0
        %1125 = vmatpush1.bf16.msra.mxu0 %v1077
        %1126 = vmatprep.mubr.bf16.mxu0 %v946
        %1127 = vmatmul.mubr.bf16.gmra.mrb[0].mxu0 %v945
        %v1128 = vpop.f32.mrb[0].mxu0
        %v1129 = vadd.f32 %v997, %v1128
        %v1130 = vpop.f32.mrb[0].mxu0
        %v1131 = vpop.f32.mrb[0].mxu0
        %v1132 = vadd.f32 %v997, %v1131
        %v1133 = vpop.f32.mrb[0].mxu0
        %1134 = vmatprep.mubr.bf16.mxu0 %v948
        %1135 = vmatmul.mubr.bf16.gmra.mrb[0].mxu0 %v947
        %v1136 = vpop.f32.mrb[0].mxu0
        %v1137 = vadd.f32 %v997, %v1136
        %v1138 = vpop.f32.mrb[0].mxu0
        %v1139 = vpop.f32.mrb[0].mxu0
        %v1140 = vadd.f32 %v997, %v1139
        %v1141 = vpop.f32.mrb[0].mxu0
        %1142 = vmatprep.mubr.bf16.mxu0 %v950
        %1143 = vmatmul.mubr.bf16.gmra.mrb[0].mxu0 %v949
        %v1144 = vpop.f32.mrb[0].mxu0
        %v1145 = vadd.f32 %v997, %v1144
        %v1146 = vpop.f32.mrb[0].mxu0
        %v1147 = vpop.f32.mrb[0].mxu0
        %v1148 = vadd.f32 %v997, %v1147
        %v1149 = vpop.f32.mrb[0].mxu0
        %1150 = vmatprep.mubr.bf16.mxu0 %v952
        %1151 = vmatmul.mubr.bf16.gmra.mrb[0].mxu0 %v951
        %v1152 = vpop.f32.mrb[0].mxu0
        %v1153 = vadd.f32 %v997, %v1152
        %v1154 = vpop.f32.mrb[0].mxu0
        %v1155 = vpop.f32.mrb[0].mxu0
        %v1156 = vadd.f32 %v997, %v1155
        %v1157 = vpop.f32.mrb[0].mxu0
        %1158 = vmatprep.mubr.bf16.mxu0 %v954
        %1159 = vmatmul.mubr.bf16.gmra.mrb[0].mxu0 %v953
        %v1160 = vpop.f32.mrb[0].mxu0
        %v1161 = vadd.f32 %v997, %v1160
        %v1162 = vpop.f32.mrb[0].mxu0
        %v1163 = vpop.f32.mrb[0].mxu0
        %v1164 = vadd.f32 %v997, %v1163
        %v1165 = vpop.f32.mrb[0].mxu0
        %1166 = vmatprep.mubr.bf16.mxu0 %v956
        %1167 = vmatmul.mubr.bf16.gmra.mrb[0].mxu0 %v955
        %v1168 = vpop.f32.mrb[0].mxu0
        %v1169 = vadd.f32 %v997, %v1168
        %v1170 = vpop.f32.mrb[0].mxu0
        %v1171 = vpop.f32.mrb[0].mxu0
        %v1172 = vadd.f32 %v997, %v1171
        %v1173 = vpop.f32.mrb[0].mxu0
        %1174 = vmatprep.mubr.bf16.mxu0 %v958
        %1175 = vmatmul.mubr.bf16.gmra.mrb[0].mxu0 %v957
        %v1176 = vpop.f32.mrb[0].mxu0
        %v1177 = vadd.f32 %v997, %v1176
        %v1178 = vpop.f32.mrb[0].mxu0
        %v1179 = vpop.f32.mrb[0].mxu0
        %v1180 = vadd.f32 %v997, %v1179
        %v1181 = vpop.f32.mrb[0].mxu0
        %1182 = vmatprep.mubr.bf16.mxu0 %v960
        %1183 = vmatmul.mubr.bf16.gmra.mrb[0].mxu0 %v959
        %v1184 = vpop.f32.mrb[0].mxu0
        %v1185 = vadd.f32 %v997, %v1184
        %v1186 = vpop.f32.mrb[0].mxu0
        %v1187 = vpop.f32.mrb[0].mxu0
        %v1188 = vadd.f32 %v997, %v1187
        %v1189 = vpop.f32.mrb[0].mxu0
        %1190 = vdwg.mxu0
        %1191 = vst [vmem:[%s298] sm:$0xff] %v1129
        %1192 = vst [vmem:[%s298 + $0x8] sm:$0xff] %v1132
        %1193 = vst [vmem:[%s298 + $0x10] sm:$0xff] %v1137
        %1194 = vst [vmem:[%s298 + $0x18] sm:$0xff] %v1140
        %1195 = vst [vmem:[%s298 + $0x20] sm:$0xff] %v1145
        %1196 = vst [vmem:[%s298 + $0x28] sm:$0xff] %v1148
        %1197 = vst [vmem:[%s298 + $0x30] sm:$0xff] %v1153
        %1198 = vst [vmem:[%s298 + $0x38] sm:$0xff] %v1156
        %1199 = vst [vmem:[%s298 + $0x40] sm:$0xff] %v1161
        %1200 = vst [vmem:[%s298 + $0x48] sm:$0xff] %v1164
        %1201 = vst [vmem:[%s298 + $0x50] sm:$0xff] %v1169
        %1202 = vst [vmem:[%s298 + $0x58] sm:$0xff] %v1172
        %1203 = vst [vmem:[%s298 + $0x60] sm:$0xff] %v1177
        %1204 = vst [vmem:[%s298 + $0x68] sm:$0xff] %v1180
        %1205 = vst [vmem:[%s298 + $0x70] sm:$0xff] %v1185
        %1206 = vst [vmem:[%s298 + $0x78] sm:$0xff] %v1188
        %s1207 = sand.u32 %s142, 1
        %s1208 = scalar_lea.sflag [#allocation4], %s1207
        %s1209 = sand.u32 %s142, 1
        %s1210 = smul.addr %s1209, 128
        %s1211 = scalar_lea.vmem [#allocation11], %s1210
        // Predicated region
        $region61: #{tpu_custom_call.1} parent=39 // pred_check
          %p1212 = pneg %p152
        $region62: #{tpu_custom_call.1} parent=39 // pred_check_branch
          %1214 = sbr.rel (%p1212) target = $region64
        $region63: #{tpu_custom_call.1} parent=39 // pred_region
          %s1215 = smul.u32 16, %s24
          %s1217 = ssub.s32 2048, 2048
          %1218 = vsyncadd %s1208, %s1217
          %s1219 = smul.addr %s1215, 128
          %s1220 = scalar_lea.hbm %s5, %s1219
          %s1221 = sshll.u32 %s1211, 4
          %s1222 = int_to_ptr.vmem [resolvable:$true] %s1221
          %1227 = dma.vmem_to_hbm [thread:$0]  %s1222, 2048, %s1220, %s1208, 128, 128, 8
        $region64: #{tpu_custom_call.1} parent=39 // pred_fallthru
          _
      $region40: #{tpu_custom_call.1} parent=5 // pred_fallthru
        _
      %p1228 = scmp.le.s32.totalorder 2, %s19
      // Predicated region
      $region65: #{tpu_custom_call.1} parent=5 // pred_check
        %p1229 = pneg %p1228
      $region66: #{tpu_custom_call.1} parent=5 // pred_check_branch
        %1231 = sbr.rel (%p1229) target = $region68
      $region67: #{tpu_custom_call.1} parent=5 // pred_region
        %s1232 = ssub.s32 %s19, 2
        // Predicated region
        $region69: #{tpu_custom_call.1} parent=67 // pred_check
          %p1233 = pneg %p158
        $region70: #{tpu_custom_call.1} parent=67 // pred_check_branch
          %1235 = sbr.rel (%p1233) target = $region72
        $region71: #{tpu_custom_call.1} parent=67 // pred_region
          %s1236 = sand.u32 %s143, 1
          %s1237 = scalar_lea.sflag [#allocation4], %s1236
          %s1238 = sand.u32 %s143, 1
          %s1239 = smul.addr %s1238, 128
          %s1240 = scalar_lea.vmem [#allocation11], %s1239
          %1241 = dma.done %s1237, 2048
        $region72: #{tpu_custom_call.1} parent=67 // pred_fallthru
          _
      $region68: #{tpu_custom_call.1} parent=5 // pred_fallthru
        _
    $region6: #{tpu_custom_call.1} parent=1 // loop_footer
      %s23 = sadd.s32 1, %s19
    $region7: #{tpu_custom_call.1} parent=1 // loop_footer_branch
      %18 = sbr.rel target = $region3
    $region8: #{tpu_custom_call.1} parent=1 // loop_exit
      _
    %1242 = vsyncpa [#allocation3], 1
    %s1243 = scalar_lea.sflag [#allocation3], 1
    %1244 = vsyncpa %s1243, 1
    %1245 = vsyncpa [#allocation6], 1
    %1246 = vsyncpa [#allocation9], 1
    %1247 = vsyncpa [#allocation4], 1
    %s1248 = scalar_lea.sflag [#allocation4], 1
    %1249 = vsyncpa %s1248, 1

</llo_original>
